<compile_context>
chip_gen: v7x
topology: tpu7x:2x2x1
jax: 0.10.0
libtpu: 0.0.40
codegen_flags: <defaults>
</compile_context>

<pallas_src>
import functools

import jax
import jax.numpy as jnp
from jax.experimental import pallas as pl
from jax.experimental.pallas import tpu as pltpu

_LANE = 128
_TM_CAP, _TN_CAP, _TK_CAP = 512, 512, 2048
_VMEM_TILE_BUDGET = 40 << 20          # double-buffered tiles + acc, bytes
_SUPPORTED_NONLINEARITIES = ("relu", "tanh", "sigmoid", "gelu", "elu", "softplus")


def _round_up(x, m):
    return ((x + m - 1) // m) * m


def _sublane_min(dtype):
    # 8 for 4-byte dtypes, 16 for bf16/fp16, 32 for int8/fp8.
    return max(8, 32 // jnp.dtype(dtype).itemsize)


def _choose_tile(dim, align, cap):
    """Tile size (multiple of `align`, <= cap) minimizing padded extent of `dim`.

    Tie-break towards the largest tile. Returns (tile, padded_dim). If `dim` is
    already a multiple of `align`, the chosen tile always divides it exactly.
    """
    dim_aligned = _round_up(max(dim, 1), align)
    cap = max(align, min(cap, dim_aligned))
    best_t, best_pad = align, _round_up(dim, align)
    t = align
    while t <= cap:
        pad = _round_up(dim, t)
        if pad < best_pad or (pad == best_pad and t > best_t):
            best_t, best_pad = t, pad
        t += align
    return best_t, best_pad


def _apply_nonlinearity(acc, nonlinearity):
    if nonlinearity is None:
        return acc
    if nonlinearity == "relu":
        return jnp.maximum(acc, 0.0)
    if nonlinearity == "tanh":
        return jnp.tanh(acc)
    if nonlinearity == "sigmoid":
        return jax.nn.sigmoid(acc)
    if nonlinearity == "gelu":
        # Exact erf gelu: matches torch.nn.functional.gelu default.
        return jax.nn.gelu(acc, approximate=False)
    if nonlinearity == "elu":
        return jax.nn.elu(acc)
    if nonlinearity == "softplus":
        return jax.nn.softplus(acc)
    raise ValueError(f"unsupported nonlinearity: {nonlinearity}")


# ------------------------------- kernel -------------------------------------


def _fc_kernel(*refs, nonlinearity, has_bias, acc_in_out):
    if acc_in_out:
        if has_bias:
            x_ref, w_ref, b_ref, o_ref = refs
        else:
            x_ref, w_ref, o_ref = refs
            b_ref = None
        acc_ref = o_ref                      # accumulate straight into f32 output
    else:
        if has_bias:
            x_ref, w_ref, b_ref, o_ref, acc_ref = refs
        else:
            x_ref, w_ref, o_ref, acc_ref = refs
            b_ref = None

    k = pl.program_id(2)

    @pl.when(k == 0)
    def _():
        acc_ref[...] = jnp.zeros_like(acc_ref)

    # x tile (tm, tk) @ w tile (tk, tn) -> (tm, tn), canonical MXU contraction.
    acc_ref[...] += jnp.dot(
        x_ref[...], w_ref[...], preferred_element_type=jnp.float32
    )

    need_epilogue = has_bias or (nonlinearity is not None) or (not acc_in_out)
    if need_epilogue:
        @pl.when(k == pl.num_programs(2) - 1)
        def _():
            acc = acc_ref[...]
            if b_ref is not None:
                acc = acc + b_ref[...]                      # (1, tn) broadcast, f32
            acc = _apply_nonlinearity(acc, nonlinearity)
            o_ref[...] = acc.astype(o_ref.dtype)


# ----------------------------- host wrappers ---------------------------------


def prepare_fc_params(weight, bias=None, compute_dtype=None):
    """One-time parameter prep (call at init, NOT per forward pass).

    weight: (hidden_size, input_size)  -> returns weight transposed to
            (k_pad, n_pad) = 128-aligned (input, hidden), cast to compute_dtype.
    bias:   (hidden_size,) or None     -> (1, n_pad) float32 or None.
    """
    hidden_size, input_size = weight.shape
    cdt = jnp.dtype(compute_dtype) if compute_dtype is not None else weight.dtype
    k_pad = _round_up(input_size, _LANE)
    n_pad = _round_up(hidden_size, _LANE)

    w_t = weight.T                                           # (input, hidden)
    if (k_pad, n_pad) != (input_size, hidden_size):
        w_t = jnp.pad(w_t, ((0, k_pad - input_size), (0, n_pad - hidden_size)))
    w_t = w_t.astype(cdt)

    b_p = None
    if bias is not None:
        b = bias.astype(jnp.float32)
        if n_pad != hidden_size:
            b = jnp.pad(b, (0, n_pad - hidden_size))
        b_p = b.reshape(1, n_pad)
    return w_t, b_p


def fc_forward(x, w_prepared, b_prepared, hidden_size, nonlinearity=None,
               out_dtype=None, max_tiles=(_TM_CAP, _TN_CAP, _TK_CAP)):
    """Forward pass with pre-prepared (transposed/padded/cast) parameters."""
    if nonlinearity is not None and nonlinearity not in _SUPPORTED_NONLINEARITIES:
        raise ValueError(
            f"Unsupported nonlinearity {nonlinearity!r}; "
            f"supported: {_SUPPORTED_NONLINEARITIES}"
        )

    batch, input_size = x.shape
    k_pad, n_pad = w_prepared.shape
    assert k_pad >= input_size and k_pad % _LANE == 0
    assert n_pad >= hidden_size and n_pad % _LANE == 0

    cdt = w_prepared.dtype
    out_dtype = x.dtype if out_dtype is None else jnp.dtype(out_dtype)
    has_bias = b_prepared is not None
    acc_in_out = jnp.dtype(out_dtype) == jnp.dtype(jnp.float32)

    in_bytes = jnp.dtype(cdt).itemsize
    out_bytes = jnp.dtype(out_dtype).itemsize

    # ---- tile selection (minimize padding, stay inside the VMEM budget) ----
    tm_cap, tn_cap, tk_cap = max_tiles
    tm, m_pad = _choose_tile(batch, _sublane_min(cdt), tm_cap)
    tn, _ = _choose_tile(n_pad, _LANE, tn_cap)      # divides n_pad exactly
    tk, _ = _choose_tile(k_pad, _LANE, tk_cap)      # divides k_pad exactly

    # Megacore: avoid a 1x1x(K) output grid on big problems (v7x has 2 TCs).
    if ((m_pad // tm) * (n_pad // tn) == 1 and n_pad // _LANE >= 2
            and m_pad * n_pad * k_pad >= (1 << 24)):
        tn, _ = _choose_tile(n_pad, _LANE, n_pad // 2)

    def _footprint(tm_, tn_, tk_):
        f = 2 * (tm_ * tk_ + tk_ * tn_) * in_bytes       # x & W, double-buffered
        f += 2 * tm_ * tn_ * out_bytes                    # output, double-buffered
        if has_bias:
            f += 2 * tn_ * 4
        if not acc_in_out:
            f += tm_ * tn_ * 4                            # f32 accumulator scratch
        return f

    while _footprint(tm, tn, tk) > _VMEM_TILE_BUDGET and tk > _LANE:
        tk, _ = _choose_tile(k_pad, _LANE, tk - _LANE)
    while _footprint(tm, tn, tk) > _VMEM_TILE_BUDGET and tn > _LANE:
        tn, _ = _choose_tile(n_pad, _LANE, tn - _LANE)

    grid = (m_pad // tm, n_pad // tn, k_pad // tk)
    m_tiles, n_tiles, _ = grid

    # ---- pad/cast activations (weight was prepared once, outside this call) ----
    x_c = x.astype(cdt) if x.dtype != cdt else x
    if (m_pad, k_pad) != (batch, input_size):
        x_c = jnp.pad(x_c, ((0, m_pad - batch), (0, k_pad - input_size)))

    inputs = [x_c, w_prepared]
    in_specs = [
        pl.BlockSpec((tm, tk), lambda i, j, k: (i, k)),
        pl.BlockSpec((tk, tn), lambda i, j, k: (k, j)),
    ]
    if has_bias:
        inputs.append(b_prepared)
        in_specs.append(pl.BlockSpec((1, tn), lambda i, j, k: (0, j)))

    scratch_shapes = [] if acc_in_out else [pltpu.VMEM((tm, tn), jnp.float32)]

    kernel = functools.partial(
        _fc_kernel, nonlinearity=nonlinearity, has_bias=has_bias,
        acc_in_out=acc_in_out)

    # ---- cost estimate: count re-reads across the output tile grid ----
    flops = 2 * m_pad * n_pad * k_pad
    transcendentals = (
        m_pad * n_pad
        if nonlinearity in ("tanh", "sigmoid", "gelu", "elu", "softplus") else 0)
    bytes_accessed = (m_pad * k_pad * in_bytes * n_tiles
                      + k_pad * n_pad * in_bytes * m_tiles
                      + m_pad * n_pad * out_bytes)
    if has_bias:
        bytes_accessed += n_pad * 4 * m_tiles

    vmem_limit = int(min(56 << 20, max(32 << 20, _footprint(tm, tn, tk) + (8 << 20))))

    out_p = pl.pallas_call(
        kernel,
        out_shape=jax.ShapeDtypeStruct((m_pad, n_pad), out_dtype),
        grid_spec=pltpu.PrefetchScalarGridSpec(
            num_scalar_prefetch=0,
            grid=grid,
            in_specs=in_specs,
            out_specs=pl.BlockSpec((tm, tn), lambda i, j, k: (i, j)),
            scratch_shapes=scratch_shapes,
        ),
        compiler_params=pltpu.CompilerParams(
            dimension_semantics=("parallel", "parallel", "arbitrary"),
            vmem_limit_bytes=vmem_limit,
        ),
        cost_estimate=pl.CostEstimate(
            flops=flops,
            transcendentals=transcendentals,
            bytes_accessed=bytes_accessed,
        ),
    )(*inputs)

    if (m_pad, n_pad) != (batch, hidden_size):
        out_p = out_p[:batch, :hidden_size]
    return out_p


def fc_layer(x, weight, bias=None, nonlinearity=None, compute_dtype=None):
    """Convenience one-shot wrapper (pads/transposes the weight on every call).

    For repeated calls (the normal FCLayer use case), call prepare_fc_params()
    once at parameter init and fc_forward() per step.
    """
    w_p, b_p = prepare_fc_params(weight, bias, compute_dtype)
    return fc_forward(x, w_p, b_p, weight.shape[0], nonlinearity,
                      out_dtype=x.dtype)


# ------------------------------ reference ------------------------------------


def _ref_fc(x, weight, bias, nonlinearity):
    out = x @ weight.T
    if bias is not None:
        out = out + bias
    return _apply_nonlinearity(out, nonlinearity)


if __name__ == "__main__":
    key = jax.random.PRNGKey(0)

    # --- Test 1: FCLayer defaults (bias=True, no nonlinearity), small shapes ---
    batch, input_size, hidden_size = 2, 32, 64
    k_x, k_w, key = jax.random.split(key, 3)
    # FCLayer.init_hidden: weight ~ U(-r, r), r = 1/sqrt(input*hidden); bias = 0.
    r = 1.0 / jnp.sqrt(jnp.float32(input_size * hidden_size))
    weight = jax.random.uniform(k_w, (hidden_size, input_size), jnp.float32, -r, r)
    bias = jnp.zeros((hidden_size,), jnp.float32)
    x = jax.random.normal(k_x, (batch, input_size), jnp.float32)

    out = fc_layer(x, weight, bias, nonlinearity=None)
    jax.block_until_ready(out)
    ref = _ref_fc(x, weight, bias, None)
    assert out.shape == (batch, hidden_size)
    assert jnp.allclose(out, ref, atol=1e-5, rtol=1e-5)

    # --- Test 2: prepared params, tanh, no bias, forced multi-tile M/N/K grid ---
    b2, in2, hid2 = 16, 256, 384
    k_x2, k_w2, key = jax.random.split(key, 3)
    r2 = 1.0 / jnp.sqrt(jnp.float32(in2 * hid2))
    w2 = jax.random.uniform(k_w2, (hid2, in2), jnp.float32, -r2, r2)
    x2 = jax.random.normal(k_x2, (b2, in2), jnp.float32)

    w2_p, b2_p = prepare_fc_params(w2, None)                 # one-time prep
    out2 = fc_forward(x2, w2_p, b2_p, hid2, nonlinearity="tanh",
                      max_tiles=(512, 128, 128))             # grid (1, 3, 2)
    jax.block_until_ready(out2)
    ref2 = _ref_fc(x2, w2, None, "tanh")
    assert out2.shape == (b2, hid2)
    assert jnp.allclose(out2, ref2, atol=1e-5, rtol=1e-5)

    # --- Test 3: bf16 compute path (MXU-native), f32 accumulate/output ---------
    w3_p, b3_p = prepare_fc_params(w2, bias=jnp.zeros((hid2,), jnp.float32),
                                   compute_dtype=jnp.bfloat16)
    out3 = fc_forward(x2, w3_p, b3_p, hid2, nonlinearity="relu")
    jax.block_until_ready(out3)
    ref3 = _ref_fc(x2, w2, jnp.zeros((hid2,), jnp.float32), "relu")
    assert out3.shape == (b2, hid2)
    assert jnp.allclose(out3, ref3, atol=1e-2, rtol=5e-2)

    print("KERNEL_OK")
</pallas_src>

<mosaic_0001>
module attributes {stable_mosaic.version = 11 : i64} {
  func.func @_fc_kernel(%arg0: i32, %arg1: i32, %arg2: i32, %arg3: memref<8x128xf32, #tpu.memory_space<vmem>>, %arg4: memref<128x128xf32, #tpu.memory_space<vmem>>, %arg5: memref<1x128xf32, #tpu.memory_space<vmem>>, %arg6: memref<8x128xf32, #tpu.memory_space<vmem>>) attributes {dimension_semantics = [#tpu.dimension_semantics<parallel>, #tpu.dimension_semantics<parallel>, #tpu.dimension_semantics<arbitrary>], iteration_bounds = array<i64: 1, 1, 1>, scalar_prefetch = 0 : i64, scratch_operands = 0 : i64, tpu.core_type = #tpu.core_type<tc>, window_params = [{transform_indices = @transform_0, window_bounds = array<i64: 8, 128>}, {transform_indices = @transform_1, window_bounds = array<i64: 128, 128>}, {transform_indices = @transform_2, window_bounds = array<i64: 1, 128>}, {transform_indices = @transform_3, window_bounds = array<i64: 8, 128>}]} {
    %c0_i32 = arith.constant 0 : i32
    %0 = arith.cmpi eq, %arg2, %c0_i32 : i32
    %1 = arith.extui %0 : i1 to i32
    %c0_i32_0 = arith.constant 0 : i32
    %2 = arith.cmpi ne, %1, %c0_i32_0 : i32
    scf.if %2 {
      %cst_10 = arith.constant 0.000000e+00 : f32
      %12 = vector.broadcast %cst_10 : f32 to vector<8x128xf32>
      %c0_11 = arith.constant 0 : index
      %c0_12 = arith.constant 0 : index
      %13 = vector.load %arg6[%c0_11, %c0_12] : memref<8x128xf32, #tpu.memory_space<vmem>>, vector<8x128xf32>
      tpu.vector_store %arg6[%c0_11, %c0_12], %12 {strides = array<i32>} : memref<8x128xf32, #tpu.memory_space<vmem>>, vector<8x128xf32>,
    } else {
    }
    %c0 = arith.constant 0 : index
    %c0_1 = arith.constant 0 : index
    %3 = vector.load %arg6[%c0, %c0_1] : memref<8x128xf32, #tpu.memory_space<vmem>>, vector<8x128xf32>
    %c0_2 = arith.constant 0 : index
    %c0_3 = arith.constant 0 : index
    %4 = vector.load %arg3[%c0_2, %c0_3] : memref<8x128xf32, #tpu.memory_space<vmem>>, vector<8x128xf32>
    %c0_4 = arith.constant 0 : index
    %c0_5 = arith.constant 0 : index
    %5 = vector.load %arg4[%c0_4, %c0_5] : memref<128x128xf32, #tpu.memory_space<vmem>>, vector<128x128xf32>
    %cst = arith.constant dense<0.000000e+00> : vector<8x128xf32>
    %6 = tpu.matmul %4, %5, %cst {dimension_numbers = #tpu.dot_dimension_numbers<[1], [0], [0], [1], [0, 0, 1, 1], [], []>} : vector<8x128xf32>, vector<128x128xf32>, vector<8x128xf32> -> vector<8x128xf32>
    %7 = arith.addf %3, %6 : vector<8x128xf32>
    %c0_6 = arith.constant 0 : index
    %c0_7 = arith.constant 0 : index
    %8 = vector.load %arg6[%c0_6, %c0_7] : memref<8x128xf32, #tpu.memory_space<vmem>>, vector<8x128xf32>
    tpu.vector_store %arg6[%c0_6, %c0_7], %7 {strides = array<i32>} : memref<8x128xf32, #tpu.memory_space<vmem>>, vector<8x128xf32>,
    %c0_i32_8 = arith.constant 0 : i32
    %9 = arith.cmpi eq, %arg2, %c0_i32_8 : i32
    %10 = arith.extui %9 : i1 to i32
    %c0_i32_9 = arith.constant 0 : i32
    %11 = arith.cmpi ne, %10, %c0_i32_9 : i32
    scf.if %11 {
      %c0_10 = arith.constant 0 : index
      %c0_11 = arith.constant 0 : index
      %12 = vector.load %arg6[%c0_10, %c0_11] : memref<8x128xf32, #tpu.memory_space<vmem>>, vector<8x128xf32>
      %c0_12 = arith.constant 0 : index
      %c0_13 = arith.constant 0 : index
      %13 = vector.load %arg5[%c0_12, %c0_13] : memref<1x128xf32, #tpu.memory_space<vmem>>, vector<1x128xf32>
      %14 = vector.broadcast %13 : vector<1x128xf32> to vector<8x128xf32>
      %15 = arith.addf %12, %14 : vector<8x128xf32>
      %c0_14 = arith.constant 0 : index
      %c0_15 = arith.constant 0 : index
      %16 = vector.load %arg6[%c0_14, %c0_15] : memref<8x128xf32, #tpu.memory_space<vmem>>, vector<8x128xf32>
      tpu.vector_store %arg6[%c0_14, %c0_15], %15 {strides = array<i32>} : memref<8x128xf32, #tpu.memory_space<vmem>>, vector<8x128xf32>,
    } else {
    }
    return
  }
  func.func @transform_0(%arg0: i32, %arg1: i32, %arg2: i32) -> (i32, i32) {
    %c0_i32 = arith.constant 0 : i32
    return %arg0, %arg2 : i32, i32
  }
  func.func @transform_1(%arg0: i32, %arg1: i32, %arg2: i32) -> (i32, i32) {
    %c0_i32 = arith.constant 0 : i32
    return %arg2, %arg1 : i32, i32
  }
  func.func @transform_2(%arg0: i32, %arg1: i32, %arg2: i32) -> (i32, i32) {
    %c0_i32 = arith.constant 0 : i32
    %c0_i32_0 = arith.constant 0 : i32
    return %c0_i32, %arg1 : i32, i32
  }
  func.func @transform_3(%arg0: i32, %arg1: i32, %arg2: i32) -> (i32, i32) {
    %c0_i32 = arith.constant 0 : i32
    return %arg0, %arg1 : i32, i32
  }
}

</mosaic_0001>

<llo_original>
// kernel: tpu_custom_call.1
$region0: #{tpu_custom_call.1}
  #allocation0 [shape = 'u32[]', space=smem, size = 0x4, offset = 0x4, fixed_abs, tag = 'smem constant byte address 0x4 - core index']
  #allocation1 [shape = 'u32[144,128]{1,0:T(1,128)}', space=vmem, size = 0x12000, scoped, tag = 'internal scratch']
  %s0 = inlined_call_operand.hbm [shape: f32[8,128], index: 0, kind: input, shape index: {}]
  %s1 = inlined_call_operand.hbm [shape: f32[128,128], index: 1, kind: input, shape index: {}]
  %s2 = inlined_call_operand.vmem [shape: f32[1,128], index: 2, kind: input, shape index: {}]
  %s3 = inlined_call_operand.hbm [shape: f32[8,128], index: 3, kind: output, shape index: {}]
  %s4 = sld [smem:[#allocation0]]
  $region38: #{tpu_custom_call.1} parent=0
    _
  %s6 = ssub.s32 1, %s4
  %s7 = scalar_select 0, %s6, %s4
  $region1: #{tpu_custom_call.1} parent=0
    #allocation2 [shape = 'u8[4096]{0}', space=vmem, size = 0x1000, scoped, tag = 'input window, operand 0, single buffered']
    #allocation3 [shape = 's32[1]{0}', space=sflag, size = 0x4, scoped, tag = 'scoped memory for tpu_custom_call.1']
    #allocation4 [shape = 's32[1]{0}', space=sflag, size = 0x4, scoped, tag = 'scoped memory for tpu_custom_call.1']
    #allocation5 [shape = 'u8[65536]{0}', space=vmem, size = 0x10000, scoped, tag = 'input window, operand 1, single buffered']
    #allocation6 [shape = 's32[1]{0}', space=sflag, size = 0x4, scoped, tag = 'scoped memory for tpu_custom_call.1']
    #allocation7 [shape = 'u8[4096]{0}', space=vmem, size = 0x1000, scoped, tag = 'output window, operand 0, single buffered']
    %8 = vsyncpa [#allocation3], 0
    %9 = vsyncpa [#allocation6], 0
    %10 = vsyncpa [#allocation4], 0
    // Predicated region
    $region2: #{tpu_custom_call.1} parent=1 // pred_check
      _
    $region3: #{tpu_custom_call.1} parent=1 // pred_check_branch
      %12 = sbr.rel (0) target = $region5
    $region4: #{tpu_custom_call.1} parent=1 // pred_region
      %s14 = ssub.s32 128, 128
      %15 = vsyncadd [#allocation3], %s14
      %s17 = sshll.u32 [#allocation2], 4
      %s18 = int_to_ptr.vmem [resolvable:$true] %s17
      %20 = dma.hbm_to_vmem [thread:$0]  %s0, 128, %s18, [#allocation3]
    $region5: #{tpu_custom_call.1} parent=1 // pred_fallthru
      _
    // Predicated region
    $region6: #{tpu_custom_call.1} parent=1 // pred_check
      _
    $region7: #{tpu_custom_call.1} parent=1 // pred_check_branch
      %22 = sbr.rel (0) target = $region9
    $region8: #{tpu_custom_call.1} parent=1 // pred_region
      %s24 = ssub.s32 2048, 2048
      %25 = vsyncadd [#allocation6], %s24
      %s26 = sshll.u32 [#allocation5], 4
      %s27 = int_to_ptr.vmem [resolvable:$true] %s26
      %32 = dma.hbm_to_vmem [thread:$0]  %s1, 2048, %s27, [#allocation6], 128, 128, 8
    $region9: #{tpu_custom_call.1} parent=1 // pred_fallthru
      _
    // Predicated region
    $region10: #{tpu_custom_call.1} parent=1 // pred_check
      _
    $region11: #{tpu_custom_call.1} parent=1 // pred_check_branch
      %34 = sbr.rel (0) target = $region13
    $region12: #{tpu_custom_call.1} parent=1 // pred_region
      _
    $region13: #{tpu_custom_call.1} parent=1 // pred_fallthru
      _
    // Predicated region
    $region14: #{tpu_custom_call.1} parent=1 // pred_check
      _
    $region15: #{tpu_custom_call.1} parent=1 // pred_check_branch
      %36 = sbr.rel (0) target = $region17
    $region16: #{tpu_custom_call.1} parent=1 // pred_region
      %37 = dma.done [#allocation3], 128
    $region17: #{tpu_custom_call.1} parent=1 // pred_fallthru
      _
    // Predicated region
    $region18: #{tpu_custom_call.1} parent=1 // pred_check
      _
    $region19: #{tpu_custom_call.1} parent=1 // pred_check_branch
      %39 = sbr.rel (0) target = $region21
    $region20: #{tpu_custom_call.1} parent=1 // pred_region
      %40 = dma.done [#allocation6], 2048
    $region21: #{tpu_custom_call.1} parent=1 // pred_fallthru
      _
    %p41 = scmp.eq.s32.totalorder 0, 0
    // Predicated region
    $region22: #{tpu_custom_call.1} parent=1 // pred_check
      %p42 = pneg %p41
    $region23: #{tpu_custom_call.1} parent=1 // pred_check_branch
      %44 = sbr.rel (%p42) target = $region25
    $region24: #{tpu_custom_call.1} parent=1 // pred_region
      %45 = vst [vmem:[#allocation7] sm:$0xff] 0.0
    $region25: #{tpu_custom_call.1} parent=1 // pred_fallthru
      _
    %v46 = vld [vmem:[#allocation7] sm:$0xff]
    %v47 = vld [vmem:[#allocation2] sm:$0xff]
    %v48 = vld [vmem:[#allocation5] sm:$0xff]
    %v49 = vld [vmem:[#allocation5 + $0x8] sm:$0xff]
    %v50 = vld [vmem:[#allocation5 + $0x10] sm:$0xff]
    %v51 = vld [vmem:[#allocation5 + $0x18] sm:$0xff]
    %v52 = vld [vmem:[#allocation5 + $0x20] sm:$0xff]
    %v53 = vld [vmem:[#allocation5 + $0x28] sm:$0xff]
    %v54 = vld [vmem:[#allocation5 + $0x30] sm:$0xff]
    %v55 = vld [vmem:[#allocation5 + $0x38] sm:$0xff]
    %v56 = vld [vmem:[#allocation5 + $0x40] sm:$0xff]
    %v57 = vld [vmem:[#allocation5 + $0x48] sm:$0xff]
    %v58 = vld [vmem:[#allocation5 + $0x50] sm:$0xff]
    %v59 = vld [vmem:[#allocation5 + $0x58] sm:$0xff]
    %v60 = vld [vmem:[#allocation5 + $0x60] sm:$0xff]
    %v61 = vld [vmem:[#allocation5 + $0x68] sm:$0xff]
    %v62 = vld [vmem:[#allocation5 + $0x70] sm:$0xff]
    %v63 = vld [vmem:[#allocation5 + $0x78] sm:$0xff]
    %64 = vmatprep.subr.mxu0 0.0
    %65 = vmatpush1.msra.mxu0 %v48
    %66 = vmatprep.subr.mxu0 0.0
    %67 = vmatpush1.msra.mxu0 %v49
    %68 = vmatprep.subr.mxu0 0.0
    %69 = vmatpush1.msra.mxu0 %v50
    %70 = vmatprep.subr.mxu0 0.0
    %71 = vmatpush1.msra.mxu0 %v51
    %72 = vmatprep.subr.mxu0 0.0
    %73 = vmatpush1.msra.mxu0 %v52
    %74 = vmatprep.subr.mxu0 0.0
    %75 = vmatpush1.msra.mxu0 %v53
    %76 = vmatprep.subr.mxu0 0.0
    %77 = vmatpush1.msra.mxu0 %v54
    %78 = vmatprep.subr.mxu0 0.0
    %79 = vmatpush1.msra.mxu0 %v55
    %80 = vmatprep.subr.mxu0 0.0
    %81 = vmatpush1.msra.mxu0 %v56
    %82 = vmatprep.subr.mxu0 0.0
    %83 = vmatpush1.msra.mxu0 %v57
    %84 = vmatprep.subr.mxu0 0.0
    %85 = vmatpush1.msra.mxu0 %v58
    %86 = vmatprep.subr.mxu0 0.0
    %87 = vmatpush1.msra.mxu0 %v59
    %88 = vmatprep.subr.mxu0 0.0
    %89 = vmatpush1.msra.mxu0 %v60
    %90 = vmatprep.subr.mxu0 0.0
    %91 = vmatpush1.msra.mxu0 %v61
    %92 = vmatprep.subr.mxu0 0.0
    %93 = vmatpush1.msra.mxu0 %v62
    %94 = vmatprep.subr.mxu0 0.0
    %95 = vmatpush1.msra.mxu0 %v63
    %96 = vmatprep.subr.mxu0 0.0
    %97 = vmatpush1.msra.mxu0 0.0
    %98 = vmatprep.subr.mxu0 0.0
    %99 = vmatpush1.msra.mxu0 0.0
    %100 = vmatprep.subr.mxu0 0.0
    %101 = vmatpush1.msra.mxu0 0.0
    %102 = vmatprep.subr.mxu0 0.0
    %103 = vmatpush1.msra.mxu0 0.0
    %104 = vmatprep.subr.mxu0 0.0
    %105 = vmatpush1.msra.mxu0 0.0
    %106 = vmatprep.subr.mxu0 0.0
    %107 = vmatpush1.msra.mxu0 0.0
    %108 = vmatprep.subr.mxu0 0.0
    %109 = vmatpush1.msra.mxu0 0.0
    %110 = vmatprep.subr.mxu0 0.0
    %111 = vmatpush1.msra.mxu0 0.0
    %112 = vmatprep.subr.mxu0 0.0
    %113 = vmatpush1.msra.mxu0 0.0
    %114 = vmatprep.subr.mxu0 0.0
    %115 = vmatpush1.msra.mxu0 0.0
    %116 = vmatprep.subr.mxu0 0.0
    %117 = vmatpush1.msra.mxu0 0.0
    %118 = vmatprep.subr.mxu0 0.0
    %119 = vmatpush1.msra.mxu0 0.0
    %120 = vmatprep.subr.mxu0 0.0
    %121 = vmatpush1.msra.mxu0 0.0
    %122 = vmatprep.subr.mxu0 0.0
    %123 = vmatpush1.msra.mxu0 0.0
    %124 = vmatprep.subr.mxu0 0.0
    %125 = vmatpush1.msra.mxu0 0.0
    %126 = vmatprep.subr.mxu0 0.0
    %127 = vmatpush1.msra.mxu0 0.0
    %128 = vmatprep.mubr.f32.mxu0 0.0
    %129 = vmatmul.mubr.f32.gmra.mrb[0].mxu0 %v47
    %v130 = vpop.f32.mrb[0].mxu0
    %v131 = vadd.f32 0.0, %v130
    %v132 = vpop.f32.mrb[0].mxu0
    %133 = vdwg.mxu0
    %v134 = vadd.f32 %v46, %v131
    %135 = vst [vmem:[#allocation7] sm:$0xff] %v134
    // Predicated region
    $region26: #{tpu_custom_call.1} parent=1 // pred_check
      %p136 = pneg %p41
    $region27: #{tpu_custom_call.1} parent=1 // pred_check_branch
      %138 = sbr.rel (%p136) target = $region29
    $region28: #{tpu_custom_call.1} parent=1 // pred_region
      %v139 = vld [vmem:[#allocation7] sm:$0xff]
      %v140 = vld [vmem:[%s2] sm:$0x1]
      %v142 = vlaneseq
      %v143 = vshrl.u32 %v142, 7
      %v144 = vsub.s32 0, %v143
      %v145 = vrot.slane %v140, %v144
      %v147 = vadd.f32 %v139, %v145
      %148 = vst [vmem:[#allocation7] sm:$0xff] %v147
    $region29: #{tpu_custom_call.1} parent=1 // pred_fallthru
      _
    // Predicated region
    $region30: #{tpu_custom_call.1} parent=1 // pred_check
      _
    $region31: #{tpu_custom_call.1} parent=1 // pred_check_branch
      %150 = sbr.rel (0) target = $region33
    $region32: #{tpu_custom_call.1} parent=1 // pred_region
      %s152 = ssub.s32 128, 128
      %153 = vsyncadd [#allocation4], %s152
      %s155 = sshll.u32 [#allocation7], 4
      %s156 = int_to_ptr.vmem [resolvable:$true] %s155
      %158 = dma.vmem_to_hbm [thread:$0]  %s156, 128, %s3, [#allocation4]
    $region33: #{tpu_custom_call.1} parent=1 // pred_fallthru
      _
    // Predicated region
    $region34: #{tpu_custom_call.1} parent=1 // pred_check
      _
    $region35: #{tpu_custom_call.1} parent=1 // pred_check_branch
      %160 = sbr.rel (0) target = $region37
    $region36: #{tpu_custom_call.1} parent=1 // pred_region
      %161 = dma.done [#allocation4], 128
    $region37: #{tpu_custom_call.1} parent=1 // pred_fallthru
      _
    %162 = vsyncpa [#allocation3], 1
    %163 = vsyncpa [#allocation6], 1
    %164 = vsyncpa [#allocation4], 1

</llo_original>
